<compile_context>
chip_gen: v7x
topology: tpu7x:2x2x1
jax: 0.10.0
libtpu: 0.0.40
codegen_flags: <defaults>
</compile_context>

<pallas_src>
import jax
import jax.numpy as jnp
from jax.experimental import pallas as pl
from jax.experimental.pallas import tpu as pltpu


# ----------------------------------------------------------------------------
# Pallas kernel: fused (im2col-matmul conv) + 2x2 max-pool + bias + ReLU
# ----------------------------------------------------------------------------
def _conv_relu_pool_kernel(p_ref, w_ref, b_ref, o_ref):
    # p_ref: (4, K, TP) bf16  patches; axis 0 = position inside the 2x2 pool window
    # w_ref: (OC, K)    bf16  conv weight (VMEM-resident across the grid)
    # b_ref: (OC, 1)    f32   bias
    # o_ref: (OC, TP)   f32   pooled output tile (lane-dense along pooled pixels)
    w = w_ref[...]
    d0 = jnp.dot(w, p_ref[0], preferred_element_type=jnp.float32)  # MXU, f32 acc
    d1 = jnp.dot(w, p_ref[1], preferred_element_type=jnp.float32)
    d2 = jnp.dot(w, p_ref[2], preferred_element_type=jnp.float32)
    d3 = jnp.dot(w, p_ref[3], preferred_element_type=jnp.float32)
    # Pool max on raw accumulators; bias-add + ReLU hoisted after (monotone =>
    # identical result, 3 fewer (OC,1)->(OC,TP) broadcasts/adds/clamps).
    pooled = jnp.maximum(jnp.maximum(d0, d1), jnp.maximum(d2, d3))
    o_ref[...] = jnp.maximum(pooled + b_ref[...], 0.0).astype(o_ref.dtype)


def _pallas_conv_relu_pool(patches_t, w_t, bias_col, *, tp):
    _, K, M_pool = patches_t.shape
    OC = w_t.shape[0]
    grid = (pl.cdiv(M_pool, tp),)
    return pl.pallas_call(
        _conv_relu_pool_kernel,
        out_shape=jax.ShapeDtypeStruct((OC, M_pool), jnp.float32),
        grid=grid,
        in_specs=[
            pl.BlockSpec((4, K, tp), lambda i: (0, 0, i)),   # tiled over M (lane axis)
            pl.BlockSpec((OC, K), lambda i: (0, 0)),         # resident weight
            pl.BlockSpec((OC, 1), lambda i: (0, 0)),         # resident bias
        ],
        out_specs=pl.BlockSpec((OC, tp), lambda i: (0, i)),
        compiler_params=pltpu.CompilerParams(
            dimension_semantics=("parallel",),               # shard M across TCs (v7x)
            vmem_limit_bytes=32 * 1024 * 1024,               # double-buffered tiles stay <~5 MiB
        ),
    )(patches_t, w_t, bias_col)


# ----------------------------------------------------------------------------
# Lane-tile selection: amortize per-step overhead vs. v7x 2-core sharding
# ----------------------------------------------------------------------------
def _pick_tile(m_pool, tile_m, min_steps=8):
    if m_pool <= tile_m:
        return m_pool                          # single full-extent block
    tp = max(512, (tile_m // 512) * 512)       # lane-aligned (multiple of 128/512)
    # Shrink until we have >= min_steps grid steps (v7x megacore + pipelining),
    # but never below 4096 lanes: per-step overhead amortization wins below that.
    while tp > 4096 and pl.cdiv(m_pool, tp) < min_steps:
        tp = max(4096, ((tp // 2) // 512) * 512)
    return tp


# ----------------------------------------------------------------------------
# Layer_0 forward: conv(1->16, k=3, s=2, p=1) + ReLU + MaxPool2d(2)
# ----------------------------------------------------------------------------
def layer0_forward(x_nchw, weight_oihw, bias, *, tile_m=16384):
    """x_nchw: (B, 1, H, W) f32 -> (B, 16, OH//2, OW//2) f32 (NCHW, PyTorch semantics)."""
    B, IC, H, W = x_nchw.shape
    OC, _, KH, KW = weight_oihw.shape
    SH = SW = 2
    PH = PW = 1
    PS = 2                                   # MaxPool2d window/stride
    OH = (H + 2 * PH - KH) // SH + 1
    OW = (W + 2 * PW - KW) // SW + 1
    POH, POW = OH // PS, OW // PS            # MaxPool2d(2) floors
    M_pool = B * POH * POW
    K = IC * KH * KW

    # Cast to bf16 BEFORE padding/slicing: halves all host-glue HBM traffic.
    x_pad = jnp.pad(x_nchw.astype(jnp.bfloat16),
                    ((0, 0), (0, 0), (PH, PH), (PW, PW)))

    # Build patches directly in their final (4, K, B, POH, POW) layout with
    # 4*K strided slices -- no 6-D transpose copy.  Pooled pixel (b,po,pw),
    # pool-window position (dh,dw), tap (ic,kh,kw) reads
    #   x_pad[b, ic, PS*SH*po + SH*dh + kh, PS*SW*pw + SW*dw + kw].
    rstride, cstride = PS * SH, PS * SW
    pos = []
    for dh in range(PS):
        for dw in range(PS):
            taps = []
            for ic in range(IC):
                for kh in range(KH):
                    for kw in range(KW):
                        rs = SH * dh + kh
                        cs = SW * dw + kw
                        taps.append(
                            x_pad[:, ic,
                                  rs:rs + rstride * POH:rstride,
                                  cs:cs + cstride * POW:cstride])   # (B, POH, POW)
            pos.append(jnp.stack(taps, axis=0))                     # (K, B, POH, POW)
    patches_t = jnp.stack(pos, axis=0).reshape(4, K, M_pool)        # (4, K, M) bf16

    # weight (OC, IC, KH, KW) -> (OC, K); K order (ic, kh, kw) matches patches
    w_t = weight_oihw.reshape(OC, K).astype(jnp.bfloat16)
    b_col = bias.reshape(OC, 1).astype(jnp.float32)

    tp = _pick_tile(M_pool, tile_m)

    out_t = _pallas_conv_relu_pool(patches_t, w_t, b_col, tp=tp)    # (OC, M_pool)
    out = out_t.reshape(OC, B, POH, POW).transpose(1, 0, 2, 3)      # -> NCHW
    return out


# ----------------------------------------------------------------------------
# Deterministic parameter init (PyTorch-like fan-in uniform)
# ----------------------------------------------------------------------------
def init_params(key, in_ch=1, out_ch=16, k=3):
    kw_key, kb_key = jax.random.split(key)
    fan_in = in_ch * k * k
    bound = 1.0 / jnp.sqrt(fan_in)
    weight = jax.random.uniform(kw_key, (out_ch, in_ch, k, k),
                                minval=-bound, maxval=bound, dtype=jnp.float32)
    bias = jax.random.uniform(kb_key, (out_ch,),
                              minval=-bound, maxval=bound, dtype=jnp.float32)
    return weight, bias


if __name__ == "__main__":
    key = jax.random.PRNGKey(0)
    kx, kp = jax.random.split(key)

    # Layer_0 expects a single input channel (MNIST-style).
    B, C, H, W = 2, 1, 16, 16
    x = jax.random.normal(kx, (B, C, H, W), dtype=jnp.float32)
    weight, bias = init_params(kp)

    fwd = jax.jit(layer0_forward)
    out = jax.block_until_ready(fwd(x, weight, bias))

    # Pure-JAX reference: conv + bias + ReLU + 2x2 max-pool (all f32).
    conv = jax.lax.conv_general_dilated(
        x, weight, window_strides=(2, 2), padding=((1, 1), (1, 1)),
        dimension_numbers=("NCHW", "OIHW", "NCHW"))
    act = jnp.maximum(conv + bias.reshape(1, -1, 1, 1), 0.0)
    OH, OW = act.shape[2], act.shape[3]
    POH, POW = OH // 2, OW // 2
    ref = act[:, :, :2 * POH, :2 * POW].reshape(B, 16, POH, 2, POW, 2).max(axis=(3, 5))

    assert out.shape == (B, 16, POH, POW), out.shape
    # Tolerance widened because patches/weights are fed to the MXU as bf16
    # (accumulation and epilogue stay f32).
    assert jnp.allclose(out, ref, atol=5e-2, rtol=5e-2)

    print("KERNEL_OK")
</pallas_src>

<mosaic_0001>
module attributes {stable_mosaic.version = 11 : i64} {
  func.func @_conv_relu_pool_kernel(%arg0: i32, %arg1: memref<4x9x32xbf16, #tpu.memory_space<vmem>>, %arg2: memref<16x9xbf16, #tpu.memory_space<vmem>>, %arg3: memref<16x1xf32, #tpu.memory_space<vmem>>, %arg4: memref<16x32xf32, #tpu.memory_space<vmem>>) attributes {dimension_semantics = [#tpu.dimension_semantics<parallel>], iteration_bounds = array<i64: 1>, scalar_prefetch = 0 : i64, scratch_operands = 0 : i64, tpu.core_type = #tpu.core_type<tc>, window_params = [{transform_indices = @transform_0, window_bounds = array<i64: 4, 9, 32>}, {pipeline_mode = #tpu.pipeline_mode<synchronous>, transform_indices = @transform_1, window_bounds = array<i64: 16, 9>}, {pipeline_mode = #tpu.pipeline_mode<synchronous>, transform_indices = @transform_2, window_bounds = array<i64: 16, 1>}, {transform_indices = @transform_3, window_bounds = array<i64: 16, 32>}]} {
    %c0 = arith.constant 0 : index
    %c0_0 = arith.constant 0 : index
    %0 = vector.load %arg2[%c0, %c0_0] : memref<16x9xbf16, #tpu.memory_space<vmem>>, vector<16x9xbf16>
    %c0_1 = arith.constant 0 : index
    %c0_2 = arith.constant 0 : index
    %c0_3 = arith.constant 0 : index
    %1 = vector.load %arg1[%c0_1, %c0_2, %c0_3] : memref<4x9x32xbf16, #tpu.memory_space<vmem>>, vector<1x9x32xbf16>
    %2 = vector.shape_cast %1 : vector<1x9x32xbf16> to vector<9x32xbf16>
    %cst = arith.constant dense<0.000000e+00> : vector<16x32xf32>
    %3 = tpu.matmul %0, %2, %cst {dimension_numbers = #tpu.dot_dimension_numbers<[1], [0], [0], [1], [0, 0, 1, 1], [], []>} : vector<16x9xbf16>, vector<9x32xbf16>, vector<16x32xf32> -> vector<16x32xf32>
    %c1 = arith.constant 1 : index
    %c0_4 = arith.constant 0 : index
    %c0_5 = arith.constant 0 : index
    %4 = vector.load %arg1[%c1, %c0_4, %c0_5] : memref<4x9x32xbf16, #tpu.memory_space<vmem>>, vector<1x9x32xbf16>
    %5 = vector.shape_cast %4 : vector<1x9x32xbf16> to vector<9x32xbf16>
    %cst_6 = arith.constant dense<0.000000e+00> : vector<16x32xf32>
    %6 = tpu.matmul %0, %5, %cst_6 {dimension_numbers = #tpu.dot_dimension_numbers<[1], [0], [0], [1], [0, 0, 1, 1], [], []>} : vector<16x9xbf16>, vector<9x32xbf16>, vector<16x32xf32> -> vector<16x32xf32>
    %c2 = arith.constant 2 : index
    %c0_7 = arith.constant 0 : index
    %c0_8 = arith.constant 0 : index
    %7 = vector.load %arg1[%c2, %c0_7, %c0_8] : memref<4x9x32xbf16, #tpu.memory_space<vmem>>, vector<1x9x32xbf16>
    %8 = vector.shape_cast %7 : vector<1x9x32xbf16> to vector<9x32xbf16>
    %cst_9 = arith.constant dense<0.000000e+00> : vector<16x32xf32>
    %9 = tpu.matmul %0, %8, %cst_9 {dimension_numbers = #tpu.dot_dimension_numbers<[1], [0], [0], [1], [0, 0, 1, 1], [], []>} : vector<16x9xbf16>, vector<9x32xbf16>, vector<16x32xf32> -> vector<16x32xf32>
    %c3 = arith.constant 3 : index
    %c0_10 = arith.constant 0 : index
    %c0_11 = arith.constant 0 : index
    %10 = vector.load %arg1[%c3, %c0_10, %c0_11] : memref<4x9x32xbf16, #tpu.memory_space<vmem>>, vector<1x9x32xbf16>
    %11 = vector.shape_cast %10 : vector<1x9x32xbf16> to vector<9x32xbf16>
    %cst_12 = arith.constant dense<0.000000e+00> : vector<16x32xf32>
    %12 = tpu.matmul %0, %11, %cst_12 {dimension_numbers = #tpu.dot_dimension_numbers<[1], [0], [0], [1], [0, 0, 1, 1], [], []>} : vector<16x9xbf16>, vector<9x32xbf16>, vector<16x32xf32> -> vector<16x32xf32>
    %13 = arith.maximumf %3, %6 : vector<16x32xf32>
    %14 = arith.maximumf %9, %12 : vector<16x32xf32>
    %15 = arith.maximumf %13, %14 : vector<16x32xf32>
    %c0_13 = arith.constant 0 : index
    %c0_14 = arith.constant 0 : index
    %16 = vector.load %arg3[%c0_13, %c0_14] : memref<16x1xf32, #tpu.memory_space<vmem>>, vector<16x1xf32>
    %17 = vector.broadcast %16 : vector<16x1xf32> to vector<16x32xf32>
    %18 = arith.addf %15, %17 : vector<16x32xf32>
    %cst_15 = arith.constant 0.000000e+00 : f32
    %19 = vector.broadcast %cst_15 : f32 to vector<16x32xf32>
    %20 = arith.maximumf %18, %19 : vector<16x32xf32>
    %c0_16 = arith.constant 0 : index
    %c0_17 = arith.constant 0 : index
    %21 = vector.load %arg4[%c0_16, %c0_17] : memref<16x32xf32, #tpu.memory_space<vmem>>, vector<16x32xf32>
    tpu.vector_store %arg4[%c0_16, %c0_17], %20 {strides = array<i32>} : memref<16x32xf32, #tpu.memory_space<vmem>>, vector<16x32xf32>,
    return
  }
  func.func @transform_0(%arg0: i32) -> (i32, i32, i32) {
    %c0_i32 = arith.constant 0 : i32
    %c0_i32_0 = arith.constant 0 : i32
    %c0_i32_1 = arith.constant 0 : i32
    return %c0_i32, %c0_i32_0, %arg0 : i32, i32, i32
  }
  func.func @transform_1(%arg0: i32) -> (i32, i32) {
    %c0_i32 = arith.constant 0 : i32
    %c0_i32_0 = arith.constant 0 : i32
    %c0_i32_1 = arith.constant 0 : i32
    return %c0_i32, %c0_i32_0 : i32, i32
  }
  func.func @transform_2(%arg0: i32) -> (i32, i32) {
    %c0_i32 = arith.constant 0 : i32
    %c0_i32_0 = arith.constant 0 : i32
    %c0_i32_1 = arith.constant 0 : i32
    return %c0_i32, %c0_i32_0 : i32, i32
  }
  func.func @transform_3(%arg0: i32) -> (i32, i32) {
    %c0_i32 = arith.constant 0 : i32
    %c0_i32_0 = arith.constant 0 : i32
    return %c0_i32, %arg0 : i32, i32
  }
}

</mosaic_0001>

<llo_original>
// kernel: layer0_forward.1
$region0: #{layer0_forward.1}
  #allocation0 [shape = 'u32[]', space=smem, size = 0x4, offset = 0x4, fixed_abs, tag = 'smem constant byte address 0x4 - core index']
  #allocation1 [shape = 'u32[144,128]{1,0:T(1,128)}', space=vmem, size = 0x12000, scoped, tag = 'internal scratch']
  %s0 = inlined_call_operand.vmem [shape: bf16[4,9,32], index: 0, kind: input, shape index: {}]
  %s1 = inlined_call_operand.vmem [shape: bf16[16,9], index: 1, kind: input, shape index: {}]
  %s2 = inlined_call_operand.vmem [shape: f32[16,1], index: 2, kind: input, shape index: {}]
  %s3 = inlined_call_operand.vmem [shape: f32[16,32], index: 3, kind: output, shape index: {}]
  %s4 = sld [smem:[#allocation0]]
  $region22: #{layer0_forward.1} parent=0
    _
  %s6 = ssub.s32 1, %s4
  %s7 = scalar_select 0, %s6, %s4
  // Predicated region
  $region2: #{layer0_forward.1} parent=0 // pred_check
    _
  $region3: #{layer0_forward.1} parent=0 // pred_check_branch
    %9 = sbr.rel (0) target = $region5
  $region4: #{layer0_forward.1} parent=0 // pred_region
    _
  $region5: #{layer0_forward.1} parent=0 // pred_fallthru
    _
  // Predicated region
  $region6: #{layer0_forward.1} parent=0 // pred_check
    _
  $region7: #{layer0_forward.1} parent=0 // pred_check_branch
    %11 = sbr.rel (0) target = $region9
  $region8: #{layer0_forward.1} parent=0 // pred_region
    _
  $region9: #{layer0_forward.1} parent=0 // pred_fallthru
    _
  // Predicated region
  $region10: #{layer0_forward.1} parent=0 // pred_check
    _
  $region11: #{layer0_forward.1} parent=0 // pred_check_branch
    %13 = sbr.rel (0) target = $region13
  $region12: #{layer0_forward.1} parent=0 // pred_region
    _
  $region13: #{layer0_forward.1} parent=0 // pred_fallthru
    _
  %v15 = vld [vmem:[%s1] sm:$0xf]
  %v16 = vld [vmem:[%s1 + $0x4] sm:$0xf]
  %v17 = vld [vmem:[%s0] sm:$0xf]
  %v18 = vld [vmem:[%s0 + $0x4] sm:$0x1]
  %v21 = vunpack.c.l.b16 %v15
  %v22 = vunpack.c.l.b16 %v16
  %v23 = vpack.c.b16 %v22, %v21
  %v26 = vunpack.c.l.b16 %v17
  %v27 = vunpack.c.l.b16 %v18
  %v28 = vpack.c.b16 %v27, %v26
  %vm29 = vcmask 72704
  %v31 = vsel %vm29, %v23, 0
  %vm33 = vcmask 1043456
  %vm34 = vcmask 1044480
  %v35 = vsel %vm33, 4294967295, 65535
  %v36 = vsel %vm34, %v35, 0
  %v38 = vand.u32 %v28, %v36
  %40 = vmatprep.subr.bf16.mxu0 0
  %41 = vmatpush1.bf16.msra.mxu0 %v38
  %42 = vmatprep.subr.bf16.mxu0 0
  %43 = vmatpush1.bf16.msra.mxu0 0
  %44 = vmatprep.subr.bf16.mxu0 0
  %45 = vmatpush1.bf16.msra.mxu0 0
  %46 = vmatprep.subr.bf16.mxu0 0
  %47 = vmatpush1.bf16.msra.mxu0 0
  %48 = vmatprep.subr.bf16.mxu0 0
  %49 = vmatpush1.bf16.msra.mxu0 0
  %50 = vmatprep.subr.bf16.mxu0 0
  %51 = vmatpush1.bf16.msra.mxu0 0
  %52 = vmatprep.subr.bf16.mxu0 0
  %53 = vmatpush1.bf16.msra.mxu0 0
  %54 = vmatprep.subr.bf16.mxu0 0
  %55 = vmatpush1.bf16.msra.mxu0 0
  %56 = vmatprep.subr.bf16.mxu0 0
  %57 = vmatpush1.bf16.msra.mxu0 0
  %58 = vmatprep.subr.bf16.mxu0 0
  %59 = vmatpush1.bf16.msra.mxu0 0
  %60 = vmatprep.subr.bf16.mxu0 0
  %61 = vmatpush1.bf16.msra.mxu0 0
  %62 = vmatprep.subr.bf16.mxu0 0
  %63 = vmatpush1.bf16.msra.mxu0 0
  %64 = vmatprep.subr.bf16.mxu0 0
  %65 = vmatpush1.bf16.msra.mxu0 0
  %66 = vmatprep.subr.bf16.mxu0 0
  %67 = vmatpush1.bf16.msra.mxu0 0
  %68 = vmatprep.subr.bf16.mxu0 0
  %69 = vmatpush1.bf16.msra.mxu0 0
  %70 = vmatprep.subr.bf16.mxu0 0
  %71 = vmatpush1.bf16.msra.mxu0 0
  %72 = vmatprep.mubr.bf16.mxu0 0
  %73 = vmatmul.mubr.bf16.gmra.mrb[0].mxu0 %v31
  %v74 = vpop.f32.mrb[0].mxu0
  %v75 = vadd.f32 0.0, %v74
  %v76 = vpop.f32.mrb[0].mxu0
  %v77 = vpop.f32.mrb[0].mxu0
  %v78 = vadd.f32 0.0, %v77
  %v79 = vpop.f32.mrb[0].mxu0
  %80 = vdwg.mxu0
  %s81 = scalar_lea.vmem %s0, 8
  %v82 = vld [vmem:[%s81] sm:$0xf]
  %v83 = vld [vmem:[%s81 + $0x4] sm:$0x1]
  %v86 = vunpack.c.l.b16 %v82
  %v87 = vunpack.c.l.b16 %v83
  %v88 = vpack.c.b16 %v87, %v86
  %v90 = vand.u32 %v88, %v36
  %92 = vmatprep.subr.bf16.mxu0 0
  %93 = vmatpush1.bf16.msra.mxu0 %v90
  %94 = vmatprep.subr.bf16.mxu0 0
  %95 = vmatpush1.bf16.msra.mxu0 0
  %96 = vmatprep.subr.bf16.mxu0 0
  %97 = vmatpush1.bf16.msra.mxu0 0
  %98 = vmatprep.subr.bf16.mxu0 0
  %99 = vmatpush1.bf16.msra.mxu0 0
  %100 = vmatprep.subr.bf16.mxu0 0
  %101 = vmatpush1.bf16.msra.mxu0 0
  %102 = vmatprep.subr.bf16.mxu0 0
  %103 = vmatpush1.bf16.msra.mxu0 0
  %104 = vmatprep.subr.bf16.mxu0 0
  %105 = vmatpush1.bf16.msra.mxu0 0
  %106 = vmatprep.subr.bf16.mxu0 0
  %107 = vmatpush1.bf16.msra.mxu0 0
  %108 = vmatprep.subr.bf16.mxu0 0
  %109 = vmatpush1.bf16.msra.mxu0 0
  %110 = vmatprep.subr.bf16.mxu0 0
  %111 = vmatpush1.bf16.msra.mxu0 0
  %112 = vmatprep.subr.bf16.mxu0 0
  %113 = vmatpush1.bf16.msra.mxu0 0
  %114 = vmatprep.subr.bf16.mxu0 0
  %115 = vmatpush1.bf16.msra.mxu0 0
  %116 = vmatprep.subr.bf16.mxu0 0
  %117 = vmatpush1.bf16.msra.mxu0 0
  %118 = vmatprep.subr.bf16.mxu0 0
  %119 = vmatpush1.bf16.msra.mxu0 0
  %120 = vmatprep.subr.bf16.mxu0 0
  %121 = vmatpush1.bf16.msra.mxu0 0
  %122 = vmatprep.subr.bf16.mxu0 0
  %123 = vmatpush1.bf16.msra.mxu0 0
  %124 = vmatprep.mubr.bf16.mxu0 0
  %125 = vmatmul.mubr.bf16.gmra.mrb[0].mxu0 %v31
  %v126 = vpop.f32.mrb[0].mxu0
  %v127 = vadd.f32 0.0, %v126
  %v128 = vpop.f32.mrb[0].mxu0
  %v129 = vpop.f32.mrb[0].mxu0
  %v130 = vadd.f32 0.0, %v129
  %v131 = vpop.f32.mrb[0].mxu0
  %132 = vdwg.mxu0
  %s133 = scalar_lea.vmem %s0, 16
  %v134 = vld [vmem:[%s133] sm:$0xf]
  %v135 = vld [vmem:[%s133 + $0x4] sm:$0x1]
  %v138 = vunpack.c.l.b16 %v134
  %v139 = vunpack.c.l.b16 %v135
  %v140 = vpack.c.b16 %v139, %v138
  %v142 = vand.u32 %v140, %v36
  %144 = vmatprep.subr.bf16.mxu0 0
  %145 = vmatpush1.bf16.msra.mxu0 %v142
  %146 = vmatprep.subr.bf16.mxu0 0
  %147 = vmatpush1.bf16.msra.mxu0 0
  %148 = vmatprep.subr.bf16.mxu0 0
  %149 = vmatpush1.bf16.msra.mxu0 0
  %150 = vmatprep.subr.bf16.mxu0 0
  %151 = vmatpush1.bf16.msra.mxu0 0
  %152 = vmatprep.subr.bf16.mxu0 0
  %153 = vmatpush1.bf16.msra.mxu0 0
  %154 = vmatprep.subr.bf16.mxu0 0
  %155 = vmatpush1.bf16.msra.mxu0 0
  %156 = vmatprep.subr.bf16.mxu0 0
  %157 = vmatpush1.bf16.msra.mxu0 0
  %158 = vmatprep.subr.bf16.mxu0 0
  %159 = vmatpush1.bf16.msra.mxu0 0
  %160 = vmatprep.subr.bf16.mxu0 0
  %161 = vmatpush1.bf16.msra.mxu0 0
  %162 = vmatprep.subr.bf16.mxu0 0
  %163 = vmatpush1.bf16.msra.mxu0 0
  %164 = vmatprep.subr.bf16.mxu0 0
  %165 = vmatpush1.bf16.msra.mxu0 0
  %166 = vmatprep.subr.bf16.mxu0 0
  %167 = vmatpush1.bf16.msra.mxu0 0
  %168 = vmatprep.subr.bf16.mxu0 0
  %169 = vmatpush1.bf16.msra.mxu0 0
  %170 = vmatprep.subr.bf16.mxu0 0
  %171 = vmatpush1.bf16.msra.mxu0 0
  %172 = vmatprep.subr.bf16.mxu0 0
  %173 = vmatpush1.bf16.msra.mxu0 0
  %174 = vmatprep.subr.bf16.mxu0 0
  %175 = vmatpush1.bf16.msra.mxu0 0
  %176 = vmatprep.mubr.bf16.mxu0 0
  %177 = vmatmul.mubr.bf16.gmra.mrb[0].mxu0 %v31
  %v178 = vpop.f32.mrb[0].mxu0
  %v179 = vadd.f32 0.0, %v178
  %v180 = vpop.f32.mrb[0].mxu0
  %v181 = vpop.f32.mrb[0].mxu0
  %v182 = vadd.f32 0.0, %v181
  %v183 = vpop.f32.mrb[0].mxu0
  %184 = vdwg.mxu0
  %s185 = scalar_lea.vmem %s0, 24
  %v186 = vld [vmem:[%s185] sm:$0xf]
  %v187 = vld [vmem:[%s185 + $0x4] sm:$0x1]
  %v190 = vunpack.c.l.b16 %v186
  %v191 = vunpack.c.l.b16 %v187
  %v192 = vpack.c.b16 %v191, %v190
  %v194 = vand.u32 %v192, %v36
  %196 = vmatprep.subr.bf16.mxu0 0
  %197 = vmatpush1.bf16.msra.mxu0 %v194
  %198 = vmatprep.subr.bf16.mxu0 0
  %199 = vmatpush1.bf16.msra.mxu0 0
  %200 = vmatprep.subr.bf16.mxu0 0
  %201 = vmatpush1.bf16.msra.mxu0 0
  %202 = vmatprep.subr.bf16.mxu0 0
  %203 = vmatpush1.bf16.msra.mxu0 0
  %204 = vmatprep.subr.bf16.mxu0 0
  %205 = vmatpush1.bf16.msra.mxu0 0
  %206 = vmatprep.subr.bf16.mxu0 0
  %207 = vmatpush1.bf16.msra.mxu0 0
  %208 = vmatprep.subr.bf16.mxu0 0
  %209 = vmatpush1.bf16.msra.mxu0 0
  %210 = vmatprep.subr.bf16.mxu0 0
  %211 = vmatpush1.bf16.msra.mxu0 0
  %212 = vmatprep.subr.bf16.mxu0 0
  %213 = vmatpush1.bf16.msra.mxu0 0
  %214 = vmatprep.subr.bf16.mxu0 0
  %215 = vmatpush1.bf16.msra.mxu0 0
  %216 = vmatprep.subr.bf16.mxu0 0
  %217 = vmatpush1.bf16.msra.mxu0 0
  %218 = vmatprep.subr.bf16.mxu0 0
  %219 = vmatpush1.bf16.msra.mxu0 0
  %220 = vmatprep.subr.bf16.mxu0 0
  %221 = vmatpush1.bf16.msra.mxu0 0
  %222 = vmatprep.subr.bf16.mxu0 0
  %223 = vmatpush1.bf16.msra.mxu0 0
  %224 = vmatprep.subr.bf16.mxu0 0
  %225 = vmatpush1.bf16.msra.mxu0 0
  %226 = vmatprep.subr.bf16.mxu0 0
  %227 = vmatpush1.bf16.msra.mxu0 0
  %228 = vmatprep.mubr.bf16.mxu0 0
  %229 = vmatmul.mubr.bf16.gmra.mrb[0].mxu0 %v31
  %v230 = vpop.f32.mrb[0].mxu0
  %v231 = vadd.f32 0.0, %v230
  %v232 = vpop.f32.mrb[0].mxu0
  %v233 = vpop.f32.mrb[0].mxu0
  %v234 = vadd.f32 0.0, %v233
  %v235 = vpop.f32.mrb[0].mxu0
  %236 = vdwg.mxu0
  %v237 = vmax.f32 %v75, %v127
  %v238 = vmax.f32 %v78, %v130
  %v239 = vmax.f32 %v179, %v231
  %v240 = vmax.f32 %v182, %v234
  %v241 = vmax.f32 %v237, %v239
  %v242 = vmax.f32 %v238, %v240
  %v243 = vld [vmem:[%s2] sm:$0xff]
  %v244 = vld [vmem:[%s2 + $0x8] sm:$0xff]
  %246 = vset.pattern.permute.xlu0 0
  %247 = vperm.xlu0 %246, %v243
  %v248 = vpop.permute.xlu0 %247
  %251 = vset.pattern.permute.xlu0 0
  %252 = vperm.xlu0 %251, %v244
  %v253 = vpop.permute.xlu0 %252
  %v255 = vadd.f32 %v241, %v248
  %v256 = vadd.f32 %v242, %v253
  %v257 = vmax.f32 %v255, 0.0
  %v258 = vmax.f32 %v256, 0.0
  %vm259 = vcmask 261120
  %260 = vst.msk [vmem:[%s3] sm:$0xff] %vm259, %v257
  %261 = vst.msk [vmem:[%s3 + $0x8] sm:$0xff] %vm259, %v258
  // Predicated region
  $region14: #{layer0_forward.1} parent=0 // pred_check
    _
  $region15: #{layer0_forward.1} parent=0 // pred_check_branch
    %263 = sbr.rel (0) target = $region17
  $region16: #{layer0_forward.1} parent=0 // pred_region
    _
  $region17: #{layer0_forward.1} parent=0 // pred_fallthru
    _
  // Predicated region
  $region18: #{layer0_forward.1} parent=0 // pred_check
    _
  $region19: #{layer0_forward.1} parent=0 // pred_check_branch
    %265 = sbr.rel (0) target = $region21
  $region20: #{layer0_forward.1} parent=0 // pred_region
    _
  $region21: #{layer0_forward.1} parent=0 // pred_fallthru
    _

</llo_original>
